<compile_context>
chip_gen: v6e
topology: v6e:2x2x1
jax: 0.10.0
libtpu: 0.0.40
codegen_flags: <defaults>
</compile_context>

<pallas_src>
import functools

import jax
import jax.numpy as jnp
from jax.experimental import pallas as pl
from jax.experimental.pallas import tpu as pltpu


def _round_up(a, m):
    return ((a + m - 1) // m) * m


def _autoencoder_kernel(
    x_ref,
    w1_ref, w2_ref, w3_ref,   # encoder weights (bf16, stored (in, out))
    w4_ref, w5_ref, w6_ref,   # decoder weights (bf16, stored (in, out))
    bias_ref,                 # packed f32 biases, shape (6, maxw)
    dec_ref, enc_ref,
):
    # Layer widths are recoverable from the static weight-ref shapes.
    h0 = w1_ref.shape[1]
    h1 = w2_ref.shape[1]
    lat = w3_ref.shape[1]
    in_dim = w6_ref.shape[1]

    # Static bias slices (read once, all start at lane 0 — zero-cost views).
    b1 = bias_ref[0:1, 0:h0]
    b2 = bias_ref[1:2, 0:h1]
    b3 = bias_ref[2:3, 0:lat]
    b4 = bias_ref[3:4, 0:h1]
    b5 = bias_ref[4:5, 0:h0]
    b6 = bias_ref[5:6, 0:in_dim]

    bf16 = jnp.bfloat16
    # x arrives f32 straight from HBM; cast to bf16 here (no extra HBM pass).
    x = x_ref[...].astype(bf16)

    # ---- encoder ---- (bf16 MXU operands, f32 accumulate / elementwise)
    h = jnp.dot(x, w1_ref[...], preferred_element_type=jnp.float32) + b1
    h = jnp.maximum(h, 0.0).astype(bf16)
    h = jnp.dot(h, w2_ref[...], preferred_element_type=jnp.float32) + b2
    h = jnp.maximum(h, 0.0).astype(bf16)
    z = jnp.dot(h, w3_ref[...], preferred_element_type=jnp.float32) + b3  # f32

    # ---- decoder ----
    d = jnp.dot(z.astype(bf16), w4_ref[...], preferred_element_type=jnp.float32) + b4
    d = jnp.maximum(d, 0.0).astype(bf16)
    d = jnp.dot(d, w5_ref[...], preferred_element_type=jnp.float32) + b5
    d = jnp.maximum(d, 0.0).astype(bf16)
    d = jnp.dot(d, w6_ref[...], preferred_element_type=jnp.float32) + b6
    d = jax.nn.sigmoid(d)

    dec_ref[...] = d.astype(dec_ref.dtype)
    enc_ref[...] = z.astype(enc_ref.dtype)


def _resident_spec(shape):
    # Whole-array block; same (VMEM-resident) tile for every grid step.
    idx = (0,) * len(shape)
    return pl.BlockSpec(shape, lambda i, _idx=idx: _idx)


def pack_params(params):
    """One-time parameter preparation (outside the per-call jit graph).

    Returns (weights_bf16, bias_packed):
      weights_bf16: tuple of six (in, out) bf16 weight matrices
      bias_packed : (6, maxw) f32, each row a lane-padded bias vector
    """
    weights = tuple(jnp.asarray(w, jnp.bfloat16) for (w, _) in params)
    biases = [jnp.asarray(b, jnp.float32).reshape(1, -1) for (_, b) in params]
    maxw = _round_up(max(b.shape[1] for b in biases), 128)
    bias_packed = jnp.concatenate(
        [jnp.pad(b, ((0, 0), (0, maxw - b.shape[1]))) for b in biases], axis=0
    )
    return weights, bias_packed


def _pick_batch_tile(B):
    """Large tiles for MXU row occupancy; >=2 (and even) grid steps when possible."""
    if B <= 256:
        return _round_up(B, 16)          # single step; 16 = bf16 sublane pack
    steps = max(2, pl.cdiv(B, 1024))     # cap tile around 1024 rows
    if steps % 2:                        # even step count -> balanced v7x TCs
        steps += 1
    return _round_up(pl.cdiv(B, steps), 16)


@functools.partial(jax.jit, static_argnames=("batch_tile", "out_dtype"))
def autoencoder_forward(x, weights, bias_packed, batch_tile=None, out_dtype=None):
    """Returns (decoded, encoded), matching Autoencoder.forward.

    x           : (B, input_dim)
    weights     : from pack_params (bf16, stored (in, out))
    bias_packed : from pack_params ((6, maxw) f32)
    out_dtype   : output dtype (default x.dtype; pass jnp.bfloat16 to halve
                  output HBM traffic if downstream tolerates it).
    """
    w1, w2, w3, w4, w5, w6 = weights
    B, input_dim = x.shape
    latent_dim = w3.shape[1]
    if out_dtype is None:
        out_dtype = x.dtype
    if batch_tile is None:
        batch_tile = _pick_batch_tile(B)

    grid = (pl.cdiv(B, batch_tile),)     # ragged final block handled by Pallas

    in_specs = [
        pl.BlockSpec((batch_tile, input_dim), lambda i: (i, 0)),
        *[_resident_spec(w.shape) for w in weights],
        _resident_spec(bias_packed.shape),
    ]
    out_specs = [
        pl.BlockSpec((batch_tile, input_dim), lambda i: (i, 0)),
        pl.BlockSpec((batch_tile, latent_dim), lambda i: (i, 0)),
    ]
    out_shape = [
        jax.ShapeDtypeStruct((B, input_dim), out_dtype),
        jax.ShapeDtypeStruct((B, latent_dim), out_dtype),
    ]

    decoded, encoded = pl.pallas_call(
        _autoencoder_kernel,
        grid=grid,
        in_specs=in_specs,
        out_specs=out_specs,
        out_shape=out_shape,
        compiler_params=pltpu.CompilerParams(
            dimension_semantics=("parallel",),
            vmem_limit_bytes=32 * 1024 * 1024,
        ),
    )(x, *weights, bias_packed)

    return decoded, encoded


def init_params(key, input_dim, hidden_dims=(128, 64), latent_dim=32,
                dtype=jnp.float32):
    """Deterministic init. Weights stored as (in, out); biases as (1, out)."""
    dims = [input_dim] + list(hidden_dims) + [latent_dim]              # encoder
    dims_dec = [latent_dim] + list(hidden_dims)[::-1] + [input_dim]    # decoder
    all_dims = list(zip(dims[:-1], dims[1:])) + list(zip(dims_dec[:-1], dims_dec[1:]))

    params = []
    for (fan_in, fan_out) in all_dims:
        key, kw, kb = jax.random.split(key, 3)
        bound = 1.0 / (fan_in ** 0.5)   # PyTorch Linear default init range
        w = jax.random.uniform(kw, (fan_in, fan_out), dtype, -bound, bound)
        b = jax.random.uniform(kb, (1, fan_out), dtype, -bound, bound)
        params.append((w, b))
    return tuple(params)


def _reference_forward(x, params):
    """Plain-JAX f32 reference for validation."""
    (w1, b1), (w2, b2), (w3, b3), (w4, b4), (w5, b5), (w6, b6) = params
    h = jnp.maximum(x @ w1 + b1, 0.0)
    h = jnp.maximum(h @ w2 + b2, 0.0)
    z = h @ w3 + b3
    d = jnp.maximum(z @ w4 + b4, 0.0)
    d = jnp.maximum(d @ w5 + b5, 0.0)
    d = jax.nn.sigmoid(d @ w6 + b6)
    return d, z


if __name__ == "__main__":
    key = jax.random.PRNGKey(0)
    k_x, k_x2, k_p = jax.random.split(key, 3)

    input_dim = 256
    hidden_dims = (128, 64)
    latent_dim = 32

    params = init_params(k_p, input_dim, hidden_dims, latent_dim)
    weights, bias_packed = pack_params(params)   # one-time prep (bf16 + packed bias)

    # Case 1: small batch, single grid step.
    batch = 16
    x = jax.random.uniform(k_x, (batch, input_dim), jnp.float32)
    decoded, encoded = autoencoder_forward(x, weights, bias_packed)
    jax.block_until_ready((decoded, encoded))

    dec_ref, enc_ref = _reference_forward(x, params)
    assert decoded.shape == (batch, input_dim)
    assert encoded.shape == (batch, latent_dim)
    # bf16 MXU operands (f32 accumulate) vs the pure-f32 reference.
    assert jnp.allclose(decoded, dec_ref, atol=2e-2, rtol=2e-2)
    assert jnp.allclose(encoded, enc_ref, atol=2e-2, rtol=2e-2)

    # Case 2: batch that is not a tile multiple (exercises the ragged final
    # block + multi-step "parallel" grid; no wrapper-side pad/slice).
    batch2 = 272
    x2 = jax.random.uniform(k_x2, (batch2, input_dim), jnp.float32)
    decoded2, encoded2 = autoencoder_forward(x2, weights, bias_packed)
    jax.block_until_ready((decoded2, encoded2))

    dec_ref2, enc_ref2 = _reference_forward(x2, params)
    assert decoded2.shape == (batch2, input_dim)
    assert encoded2.shape == (batch2, latent_dim)
    assert jnp.allclose(decoded2, dec_ref2, atol=2e-2, rtol=2e-2)
    assert jnp.allclose(encoded2, enc_ref2, atol=2e-2, rtol=2e-2)

    print("KERNEL_OK")
</pallas_src>

<mosaic_0001>
module attributes {stable_mosaic.version = 11 : i64} {
  func.func @_autoencoder_kernel(%arg0: i32, %arg1: memref<16x256xf32, #tpu.memory_space<vmem>>, %arg2: memref<256x128xbf16, #tpu.memory_space<vmem>>, %arg3: memref<128x64xbf16, #tpu.memory_space<vmem>>, %arg4: memref<64x32xbf16, #tpu.memory_space<vmem>>, %arg5: memref<32x64xbf16, #tpu.memory_space<vmem>>, %arg6: memref<64x128xbf16, #tpu.memory_space<vmem>>, %arg7: memref<128x256xbf16, #tpu.memory_space<vmem>>, %arg8: memref<6x256xf32, #tpu.memory_space<vmem>>, %arg9: memref<16x256xf32, #tpu.memory_space<vmem>>, %arg10: memref<16x32xf32, #tpu.memory_space<vmem>>) attributes {dimension_semantics = [#tpu.dimension_semantics<parallel>], iteration_bounds = array<i64: 1>, scalar_prefetch = 0 : i64, scratch_operands = 0 : i64, tpu.core_type = #tpu.core_type<tc>, window_params = [{transform_indices = @transform_0, window_bounds = array<i64: 16, 256>}, {pipeline_mode = #tpu.pipeline_mode<synchronous>, transform_indices = @transform_1, window_bounds = array<i64: 256, 128>}, {pipeline_mode = #tpu.pipeline_mode<synchronous>, transform_indices = @transform_2, window_bounds = array<i64: 128, 64>}, {pipeline_mode = #tpu.pipeline_mode<synchronous>, transform_indices = @transform_3, window_bounds = array<i64: 64, 32>}, {pipeline_mode = #tpu.pipeline_mode<synchronous>, transform_indices = @transform_4, window_bounds = array<i64: 32, 64>}, {pipeline_mode = #tpu.pipeline_mode<synchronous>, transform_indices = @transform_5, window_bounds = array<i64: 64, 128>}, {pipeline_mode = #tpu.pipeline_mode<synchronous>, transform_indices = @transform_6, window_bounds = array<i64: 128, 256>}, {pipeline_mode = #tpu.pipeline_mode<synchronous>, transform_indices = @transform_7, window_bounds = array<i64: 6, 256>}, {transform_indices = @transform_8, window_bounds = array<i64: 16, 256>}, {transform_indices = @transform_9, window_bounds = array<i64: 16, 32>}]} {
    %c0 = arith.constant 0 : index
    %c0_0 = arith.constant 0 : index
    %0 = vector.load %arg8[%c0, %c0_0] : memref<6x256xf32, #tpu.memory_space<vmem>>, vector<1x128xf32>
    %c1 = arith.constant 1 : index
    %c0_1 = arith.constant 0 : index
    %1 = vector.load %arg8[%c1, %c0_1] : memref<6x256xf32, #tpu.memory_space<vmem>>, vector<1x64xf32>
    %c2 = arith.constant 2 : index
    %c0_2 = arith.constant 0 : index
    %2 = vector.load %arg8[%c2, %c0_2] : memref<6x256xf32, #tpu.memory_space<vmem>>, vector<1x32xf32>
    %c3 = arith.constant 3 : index
    %c0_3 = arith.constant 0 : index
    %3 = vector.load %arg8[%c3, %c0_3] : memref<6x256xf32, #tpu.memory_space<vmem>>, vector<1x64xf32>
    %c4 = arith.constant 4 : index
    %c0_4 = arith.constant 0 : index
    %4 = vector.load %arg8[%c4, %c0_4] : memref<6x256xf32, #tpu.memory_space<vmem>>, vector<1x128xf32>
    %c5 = arith.constant 5 : index
    %c0_5 = arith.constant 0 : index
    %5 = vector.load %arg8[%c5, %c0_5] : memref<6x256xf32, #tpu.memory_space<vmem>>, vector<1x256xf32>
    %c0_6 = arith.constant 0 : index
    %c0_7 = arith.constant 0 : index
    %6 = vector.load %arg1[%c0_6, %c0_7] : memref<16x256xf32, #tpu.memory_space<vmem>>, vector<16x256xf32>
    %7 = arith.truncf %6 : vector<16x256xf32> to vector<16x256xbf16>
    %c0_8 = arith.constant 0 : index
    %c0_9 = arith.constant 0 : index
    %8 = vector.load %arg2[%c0_8, %c0_9] : memref<256x128xbf16, #tpu.memory_space<vmem>>, vector<256x128xbf16>
    %cst = arith.constant dense<0.000000e+00> : vector<16x128xf32>
    %9 = tpu.matmul %7, %8, %cst {dimension_numbers = #tpu.dot_dimension_numbers<[1], [0], [0], [1], [0, 0, 1, 1], [], []>} : vector<16x256xbf16>, vector<256x128xbf16>, vector<16x128xf32> -> vector<16x128xf32>
    %10 = vector.broadcast %0 : vector<1x128xf32> to vector<16x128xf32>
    %11 = arith.addf %9, %10 : vector<16x128xf32>
    %cst_10 = arith.constant 0.000000e+00 : f32
    %12 = vector.broadcast %cst_10 : f32 to vector<16x128xf32>
    %13 = arith.maximumf %11, %12 : vector<16x128xf32>
    %14 = arith.truncf %13 : vector<16x128xf32> to vector<16x128xbf16>
    %c0_11 = arith.constant 0 : index
    %c0_12 = arith.constant 0 : index
    %15 = vector.load %arg3[%c0_11, %c0_12] : memref<128x64xbf16, #tpu.memory_space<vmem>>, vector<128x64xbf16>
    %cst_13 = arith.constant dense<0.000000e+00> : vector<16x64xf32>
    %16 = tpu.matmul %14, %15, %cst_13 {dimension_numbers = #tpu.dot_dimension_numbers<[1], [0], [0], [1], [0, 0, 1, 1], [], []>} : vector<16x128xbf16>, vector<128x64xbf16>, vector<16x64xf32> -> vector<16x64xf32>
    %17 = vector.broadcast %1 : vector<1x64xf32> to vector<16x64xf32>
    %18 = arith.addf %16, %17 : vector<16x64xf32>
    %cst_14 = arith.constant 0.000000e+00 : f32
    %19 = vector.broadcast %cst_14 : f32 to vector<16x64xf32>
    %20 = arith.maximumf %18, %19 : vector<16x64xf32>
    %21 = arith.truncf %20 : vector<16x64xf32> to vector<16x64xbf16>
    %c0_15 = arith.constant 0 : index
    %c0_16 = arith.constant 0 : index
    %22 = vector.load %arg4[%c0_15, %c0_16] : memref<64x32xbf16, #tpu.memory_space<vmem>>, vector<64x32xbf16>
    %cst_17 = arith.constant dense<0.000000e+00> : vector<16x32xf32>
    %23 = tpu.matmul %21, %22, %cst_17 {dimension_numbers = #tpu.dot_dimension_numbers<[1], [0], [0], [1], [0, 0, 1, 1], [], []>} : vector<16x64xbf16>, vector<64x32xbf16>, vector<16x32xf32> -> vector<16x32xf32>
    %24 = vector.broadcast %2 : vector<1x32xf32> to vector<16x32xf32>
    %25 = arith.addf %23, %24 : vector<16x32xf32>
    %26 = arith.truncf %25 : vector<16x32xf32> to vector<16x32xbf16>
    %c0_18 = arith.constant 0 : index
    %c0_19 = arith.constant 0 : index
    %27 = vector.load %arg5[%c0_18, %c0_19] : memref<32x64xbf16, #tpu.memory_space<vmem>>, vector<32x64xbf16>
    %cst_20 = arith.constant dense<0.000000e+00> : vector<16x64xf32>
    %28 = tpu.matmul %26, %27, %cst_20 {dimension_numbers = #tpu.dot_dimension_numbers<[1], [0], [0], [1], [0, 0, 1, 1], [], []>} : vector<16x32xbf16>, vector<32x64xbf16>, vector<16x64xf32> -> vector<16x64xf32>
    %29 = vector.broadcast %3 : vector<1x64xf32> to vector<16x64xf32>
    %30 = arith.addf %28, %29 : vector<16x64xf32>
    %cst_21 = arith.constant 0.000000e+00 : f32
    %31 = vector.broadcast %cst_21 : f32 to vector<16x64xf32>
    %32 = arith.maximumf %30, %31 : vector<16x64xf32>
    %33 = arith.truncf %32 : vector<16x64xf32> to vector<16x64xbf16>
    %c0_22 = arith.constant 0 : index
    %c0_23 = arith.constant 0 : index
    %34 = vector.load %arg6[%c0_22, %c0_23] : memref<64x128xbf16, #tpu.memory_space<vmem>>, vector<64x128xbf16>
    %cst_24 = arith.constant dense<0.000000e+00> : vector<16x128xf32>
    %35 = tpu.matmul %33, %34, %cst_24 {dimension_numbers = #tpu.dot_dimension_numbers<[1], [0], [0], [1], [0, 0, 1, 1], [], []>} : vector<16x64xbf16>, vector<64x128xbf16>, vector<16x128xf32> -> vector<16x128xf32>
    %36 = vector.broadcast %4 : vector<1x128xf32> to vector<16x128xf32>
    %37 = arith.addf %35, %36 : vector<16x128xf32>
    %cst_25 = arith.constant 0.000000e+00 : f32
    %38 = vector.broadcast %cst_25 : f32 to vector<16x128xf32>
    %39 = arith.maximumf %37, %38 : vector<16x128xf32>
    %40 = arith.truncf %39 : vector<16x128xf32> to vector<16x128xbf16>
    %c0_26 = arith.constant 0 : index
    %c0_27 = arith.constant 0 : index
    %41 = vector.load %arg7[%c0_26, %c0_27] : memref<128x256xbf16, #tpu.memory_space<vmem>>, vector<128x256xbf16>
    %cst_28 = arith.constant dense<0.000000e+00> : vector<16x256xf32>
    %42 = tpu.matmul %40, %41, %cst_28 {dimension_numbers = #tpu.dot_dimension_numbers<[1], [0], [0], [1], [0, 0, 1, 1], [], []>} : vector<16x128xbf16>, vector<128x256xbf16>, vector<16x256xf32> -> vector<16x256xf32>
    %43 = vector.broadcast %5 : vector<1x256xf32> to vector<16x256xf32>
    %44 = arith.addf %42, %43 : vector<16x256xf32>
    %45 = arith.negf %44 : vector<16x256xf32>
    %46 = math.exp %45 : vector<16x256xf32>
    %cst_29 = arith.constant 1.000000e+00 : f32
    %47 = vector.broadcast %cst_29 : f32 to vector<16x256xf32>
    %48 = arith.addf %47, %46 : vector<16x256xf32>
    %49 = arith.divf %47, %48 : vector<16x256xf32>
    %c0_30 = arith.constant 0 : index
    %c0_31 = arith.constant 0 : index
    %50 = vector.load %arg9[%c0_30, %c0_31] : memref<16x256xf32, #tpu.memory_space<vmem>>, vector<16x256xf32>
    tpu.vector_store %arg9[%c0_30, %c0_31], %49 {strides = array<i32>} : memref<16x256xf32, #tpu.memory_space<vmem>>, vector<16x256xf32>,
    %c0_32 = arith.constant 0 : index
    %c0_33 = arith.constant 0 : index
    %51 = vector.load %arg10[%c0_32, %c0_33] : memref<16x32xf32, #tpu.memory_space<vmem>>, vector<16x32xf32>
    tpu.vector_store %arg10[%c0_32, %c0_33], %25 {strides = array<i32>} : memref<16x32xf32, #tpu.memory_space<vmem>>, vector<16x32xf32>,
    return
  }
  func.func @transform_0(%arg0: i32) -> (i32, i32) {
    %c0_i32 = arith.constant 0 : i32
    %c0_i32_0 = arith.constant 0 : i32
    return %arg0, %c0_i32 : i32, i32
  }
  func.func @transform_1(%arg0: i32) -> (i32, i32) {
    %c0_i32 = arith.constant 0 : i32
    %c0_i32_0 = arith.constant 0 : i32
    %c0_i32_1 = arith.constant 0 : i32
    return %c0_i32, %c0_i32_0 : i32, i32
  }
  func.func @transform_2(%arg0: i32) -> (i32, i32) {
    %c0_i32 = arith.constant 0 : i32
    %c0_i32_0 = arith.constant 0 : i32
    %c0_i32_1 = arith.constant 0 : i32
    return %c0_i32, %c0_i32_0 : i32, i32
  }
  func.func @transform_3(%arg0: i32) -> (i32, i32) {
    %c0_i32 = arith.constant 0 : i32
    %c0_i32_0 = arith.constant 0 : i32
    %c0_i32_1 = arith.constant 0 : i32
    return %c0_i32, %c0_i32_0 : i32, i32
  }
  func.func @transform_4(%arg0: i32) -> (i32, i32) {
    %c0_i32 = arith.constant 0 : i32
    %c0_i32_0 = arith.constant 0 : i32
    %c0_i32_1 = arith.constant 0 : i32
    return %c0_i32, %c0_i32_0 : i32, i32
  }
  func.func @transform_5(%arg0: i32) -> (i32, i32) {
    %c0_i32 = arith.constant 0 : i32
    %c0_i32_0 = arith.constant 0 : i32
    %c0_i32_1 = arith.constant 0 : i32
    return %c0_i32, %c0_i32_0 : i32, i32
  }
  func.func @transform_6(%arg0: i32) -> (i32, i32) {
    %c0_i32 = arith.constant 0 : i32
    %c0_i32_0 = arith.constant 0 : i32
    %c0_i32_1 = arith.constant 0 : i32
    return %c0_i32, %c0_i32_0 : i32, i32
  }
  func.func @transform_7(%arg0: i32) -> (i32, i32) {
    %c0_i32 = arith.constant 0 : i32
    %c0_i32_0 = arith.constant 0 : i32
    %c0_i32_1 = arith.constant 0 : i32
    return %c0_i32, %c0_i32_0 : i32, i32
  }
  func.func @transform_8(%arg0: i32) -> (i32, i32) {
    %c0_i32 = arith.constant 0 : i32
    %c0_i32_0 = arith.constant 0 : i32
    return %arg0, %c0_i32 : i32, i32
  }
  func.func @transform_9(%arg0: i32) -> (i32, i32) {
    %c0_i32 = arith.constant 0 : i32
    %c0_i32_0 = arith.constant 0 : i32
    return %arg0, %c0_i32 : i32, i32
  }
}

</mosaic_0001>

<llo_original>
// kernel: autoencoder_forward.1
$region0: #{autoencoder_forward.1}
  #allocation0 [shape = 'u32[]', space=smem, size = 0x4, offset = 0x4, fixed_abs, tag = 'smem constant byte address 0x4 - core index']
  #allocation1 [shape = 'u32[144,128]{1,0:T(1,128)}', space=vmem, size = 0x12000, scoped, tag = 'internal scratch']
  %s0 = inlined_call_operand.hbm [shape: f32[16,256], index: 0, kind: input, shape index: {}]
  %s1 = inlined_call_operand.vmem [shape: bf16[256,128], index: 1, kind: input, shape index: {}]
  %s2 = inlined_call_operand.vmem [shape: bf16[128,64], index: 2, kind: input, shape index: {}]
  %s3 = inlined_call_operand.vmem [shape: bf16[64,32], index: 3, kind: input, shape index: {}]
  %s4 = inlined_call_operand.vmem [shape: bf16[32,64], index: 4, kind: input, shape index: {}]
  %s5 = inlined_call_operand.hbm [shape: bf16[64,128], index: 5, kind: input, shape index: {}]
  %s6 = inlined_call_operand.hbm [shape: bf16[128,256], index: 6, kind: input, shape index: {}]
  %s7 = inlined_call_operand.hbm [shape: f32[6,256], index: 7, kind: input, shape index: {}]
  %s8 = inlined_call_operand.hbm [shape: f32[16,256], index: 8, kind: output, shape index: {0}]
  %s9 = inlined_call_operand.hbm [shape: f32[16,32], index: 9, kind: output, shape index: {1}]
  %10 = xla_tuple %s8, %s9
  %s11 = sld [smem:[#allocation0]]
  $region66: #{autoencoder_forward.1} parent=0
    _
  %s13 = ssub.s32 1, %s11
  %s14 = scalar_select 0, %s13, %s11
  $region1: #{autoencoder_forward.1} parent=0
    #allocation2 [shape = 'u8[16384]{0}', space=vmem, size = 0x4000, scoped, tag = 'input window, operand 0, single buffered']
    #allocation3 [shape = 's32[1]{0}', space=sflag, size = 0x4, scoped, tag = 'scoped memory for autoencoder_forward.1']
    #allocation4 [shape = 's32[1]{0}', space=sflag, size = 0x4, scoped, tag = 'scoped memory for autoencoder_forward.1']
    #allocation5 [shape = 'u8[16384]{0}', space=vmem, size = 0x4000, scoped, tag = 'input window, operand 5, single buffered']
    #allocation6 [shape = 's32[1]{0}', space=sflag, size = 0x4, scoped, tag = 'scoped memory for autoencoder_forward.1']
    #allocation7 [shape = 'u8[65536]{0}', space=vmem, size = 0x10000, scoped, tag = 'input window, operand 6, single buffered']
    #allocation8 [shape = 'u8[8192]{0}', space=vmem, size = 0x2000, scoped, tag = 'input window, operand 7, single buffered']
    #allocation9 [shape = 's32[1]{0}', space=sflag, size = 0x4, scoped, tag = 'scoped memory for autoencoder_forward.1']
    #allocation10 [shape = 'u8[16384]{0}', space=vmem, size = 0x4000, scoped, tag = 'output window, operand 0, single buffered']
    #allocation11 [shape = 'u8[8192]{0}', space=vmem, size = 0x2000, scoped, tag = 'output window, operand 1, single buffered']
    #allocation12 [shape = 's32[1]{0}', space=sflag, size = 0x4, scoped, tag = 'scoped memory for autoencoder_forward.1']
    %15 = vsyncpa [#allocation3], 0
    %16 = vsyncpa [#allocation6], 0
    %17 = vsyncpa [#allocation9], 0
    %18 = vsyncpa [#allocation4], 0
    %19 = vsyncpa [#allocation12], 0
    // Predicated region
    $region2: #{autoencoder_forward.1} parent=1 // pred_check
      _
    $region3: #{autoencoder_forward.1} parent=1 // pred_check_branch
      %21 = sbr.rel (0) target = $region5
    $region4: #{autoencoder_forward.1} parent=1 // pred_region
      %s23 = ssub.s32 512, 512
      %24 = vsyncadd [#allocation3], %s23
      %s25 = sshll.u32 [#allocation2], 4
      %s26 = int_to_ptr.vmem [resolvable:$true] %s25
      %31 = dma.hbm_to_vmem [thread:$0]  %s0, 512, %s26, [#allocation3], 256, 256, 16
    $region5: #{autoencoder_forward.1} parent=1 // pred_fallthru
      _
    // Predicated region
    $region6: #{autoencoder_forward.1} parent=1 // pred_check
      _
    $region7: #{autoencoder_forward.1} parent=1 // pred_check_branch
      %33 = sbr.rel (0) target = $region9
    $region8: #{autoencoder_forward.1} parent=1 // pred_region
      _
    $region9: #{autoencoder_forward.1} parent=1 // pred_fallthru
      _
    // Predicated region
    $region10: #{autoencoder_forward.1} parent=1 // pred_check
      _
    $region11: #{autoencoder_forward.1} parent=1 // pred_check_branch
      %35 = sbr.rel (0) target = $region13
    $region12: #{autoencoder_forward.1} parent=1 // pred_region
      _
    $region13: #{autoencoder_forward.1} parent=1 // pred_fallthru
      _
    // Predicated region
    $region14: #{autoencoder_forward.1} parent=1 // pred_check
      _
    $region15: #{autoencoder_forward.1} parent=1 // pred_check_branch
      %37 = sbr.rel (0) target = $region17
    $region16: #{autoencoder_forward.1} parent=1 // pred_region
      _
    $region17: #{autoencoder_forward.1} parent=1 // pred_fallthru
      _
    // Predicated region
    $region18: #{autoencoder_forward.1} parent=1 // pred_check
      _
    $region19: #{autoencoder_forward.1} parent=1 // pred_check_branch
      %39 = sbr.rel (0) target = $region21
    $region20: #{autoencoder_forward.1} parent=1 // pred_region
      _
    $region21: #{autoencoder_forward.1} parent=1 // pred_fallthru
      _
    // Predicated region
    $region22: #{autoencoder_forward.1} parent=1 // pred_check
      _
    $region23: #{autoencoder_forward.1} parent=1 // pred_check_branch
      %41 = sbr.rel (0) target = $region25
    $region24: #{autoencoder_forward.1} parent=1 // pred_region
      %s43 = ssub.s32 512, 512
      %44 = vsyncadd [#allocation6], %s43
      %s45 = sshll.u32 [#allocation5], 4
      %s46 = int_to_ptr.vmem [resolvable:$true] %s45
      %51 = dma.hbm_to_vmem [thread:$0]  %s5, 512, %s46, [#allocation6], 64, 64, 4
    $region25: #{autoencoder_forward.1} parent=1 // pred_fallthru
      _
    // Predicated region
    $region26: #{autoencoder_forward.1} parent=1 // pred_check
      _
    $region27: #{autoencoder_forward.1} parent=1 // pred_check_branch
      %53 = sbr.rel (0) target = $region29
    $region28: #{autoencoder_forward.1} parent=1 // pred_region
      %s55 = ssub.s32 2048, 2048
      %56 = vsyncadd [#allocation6], %s55
      %s57 = sshll.u32 [#allocation7], 4
      %s58 = int_to_ptr.vmem [resolvable:$true] %s57
      %63 = dma.hbm_to_vmem [thread:$0]  %s6, 2048, %s58, [#allocation6], 128, 128, 8
    $region29: #{autoencoder_forward.1} parent=1 // pred_fallthru
      _
    // Predicated region
    $region30: #{autoencoder_forward.1} parent=1 // pred_check
      _
    $region31: #{autoencoder_forward.1} parent=1 // pred_check_branch
      %65 = sbr.rel (0) target = $region33
    $region32: #{autoencoder_forward.1} parent=1 // pred_region
      %s67 = ssub.s32 256, 256
      %68 = vsyncadd [#allocation9], %s67
      %s70 = sshll.u32 [#allocation8], 4
      %s71 = int_to_ptr.vmem [resolvable:$true] %s70
      %73 = dma.hbm_to_vmem [thread:$0]  %s7, 256, %s71, [#allocation9]
    $region33: #{autoencoder_forward.1} parent=1 // pred_fallthru
      _
    // Predicated region
    $region34: #{autoencoder_forward.1} parent=1 // pred_check
      _
    $region35: #{autoencoder_forward.1} parent=1 // pred_check_branch
      %75 = sbr.rel (0) target = $region37
    $region36: #{autoencoder_forward.1} parent=1 // pred_region
      %76 = dma.done [#allocation3], 512
    $region37: #{autoencoder_forward.1} parent=1 // pred_fallthru
      _
    // Predicated region
    $region38: #{autoencoder_forward.1} parent=1 // pred_check
      _
    $region39: #{autoencoder_forward.1} parent=1 // pred_check_branch
      %78 = sbr.rel (0) target = $region41
    $region40: #{autoencoder_forward.1} parent=1 // pred_region
      %79 = dma.done [#allocation6], 512
    $region41: #{autoencoder_forward.1} parent=1 // pred_fallthru
      _
    // Predicated region
    $region42: #{autoencoder_forward.1} parent=1 // pred_check
      _
    $region43: #{autoencoder_forward.1} parent=1 // pred_check_branch
      %81 = sbr.rel (0) target = $region45
    $region44: #{autoencoder_forward.1} parent=1 // pred_region
      %82 = dma.done [#allocation6], 2048
    $region45: #{autoencoder_forward.1} parent=1 // pred_fallthru
      _
    // Predicated region
    $region46: #{autoencoder_forward.1} parent=1 // pred_check
      _
    $region47: #{autoencoder_forward.1} parent=1 // pred_check_branch
      %84 = sbr.rel (0) target = $region49
    $region48: #{autoencoder_forward.1} parent=1 // pred_region
      %85 = dma.done [#allocation9], 256
    $region49: #{autoencoder_forward.1} parent=1 // pred_fallthru
      _
    %v87 = vld [vmem:[#allocation8] ss:$0 sm:$0xff]
    %v88 = vld [vmem:[#allocation8 + $0x1] ss:$0 sm:$0xff]
    %v89 = vld [vmem:[#allocation8 + $0x2] ss:$0 sm:$0xff]
    %v90 = vld [vmem:[#allocation8 + $0x3] ss:$0 sm:$0xff]
    %v91 = vld [vmem:[#allocation8 + $0x4] ss:$0 sm:$0xff]
    %s92 = scalar_lea.vmem [#allocation8], 5
    %v93 = vld [vmem:[%s92] ss:$8 sm:$0x3]
    %v94 = vld [vmem:[#allocation2] sm:$0xff]
    %v95 = vld [vmem:[#allocation2 + $0x8] sm:$0xff]
    %v96 = vld [vmem:[#allocation2 + $0x10] sm:$0xff]
    %v97 = vld [vmem:[#allocation2 + $0x18] sm:$0xff]
    %v98 = vpack.c.bf16 %v96, %v94
    %v99 = vpack.c.bf16 %v97, %v95
    %v100 = vld [vmem:[%s1] sm:$0xf]
    %v101 = vld [vmem:[%s1 + $0x4] sm:$0xf]
    %v102 = vld [vmem:[%s1 + $0x8] sm:$0xf]
    %v103 = vld [vmem:[%s1 + $0xc] sm:$0xf]
    %v104 = vld [vmem:[%s1 + $0x10] sm:$0xf]
    %v105 = vld [vmem:[%s1 + $0x14] sm:$0xf]
    %v106 = vld [vmem:[%s1 + $0x18] sm:$0xf]
    %v107 = vld [vmem:[%s1 + $0x1c] sm:$0xf]
    %v108 = vld [vmem:[%s1 + $0x20] sm:$0xf]
    %v109 = vld [vmem:[%s1 + $0x24] sm:$0xf]
    %v110 = vld [vmem:[%s1 + $0x28] sm:$0xf]
    %v111 = vld [vmem:[%s1 + $0x2c] sm:$0xf]
    %v112 = vld [vmem:[%s1 + $0x30] sm:$0xf]
    %v113 = vld [vmem:[%s1 + $0x34] sm:$0xf]
    %v114 = vld [vmem:[%s1 + $0x38] sm:$0xf]
    %v115 = vld [vmem:[%s1 + $0x3c] sm:$0xf]
    %v116 = vld [vmem:[%s1 + $0x40] sm:$0xf]
    %v117 = vld [vmem:[%s1 + $0x44] sm:$0xf]
    %v118 = vld [vmem:[%s1 + $0x48] sm:$0xf]
    %v119 = vld [vmem:[%s1 + $0x4c] sm:$0xf]
    %v120 = vld [vmem:[%s1 + $0x50] sm:$0xf]
    %v121 = vld [vmem:[%s1 + $0x54] sm:$0xf]
    %v122 = vld [vmem:[%s1 + $0x58] sm:$0xf]
    %v123 = vld [vmem:[%s1 + $0x5c] sm:$0xf]
    %v124 = vld [vmem:[%s1 + $0x60] sm:$0xf]
    %v125 = vld [vmem:[%s1 + $0x64] sm:$0xf]
    %v126 = vld [vmem:[%s1 + $0x68] sm:$0xf]
    %v127 = vld [vmem:[%s1 + $0x6c] sm:$0xf]
    %v128 = vld [vmem:[%s1 + $0x70] sm:$0xf]
    %v129 = vld [vmem:[%s1 + $0x74] sm:$0xf]
    %v130 = vld [vmem:[%s1 + $0x78] sm:$0xf]
    %v131 = vld [vmem:[%s1 + $0x7c] sm:$0xf]
    %v164 = vunpack.c.l.b16 %v100
    %v165 = vunpack.c.l.b16 %v101
    %v166 = vunpack.c.l.b16 %v102
    %v167 = vunpack.c.l.b16 %v103
    %v168 = vunpack.c.l.b16 %v104
    %v169 = vunpack.c.l.b16 %v105
    %v170 = vunpack.c.l.b16 %v106
    %v171 = vunpack.c.l.b16 %v107
    %v172 = vunpack.c.l.b16 %v108
    %v173 = vunpack.c.l.b16 %v109
    %v174 = vunpack.c.l.b16 %v110
    %v175 = vunpack.c.l.b16 %v111
    %v176 = vunpack.c.l.b16 %v112
    %v177 = vunpack.c.l.b16 %v113
    %v178 = vunpack.c.l.b16 %v114
    %v179 = vunpack.c.l.b16 %v115
    %v180 = vunpack.c.l.b16 %v116
    %v181 = vunpack.c.l.b16 %v117
    %v182 = vunpack.c.l.b16 %v118
    %v183 = vunpack.c.l.b16 %v119
    %v184 = vunpack.c.l.b16 %v120
    %v185 = vunpack.c.l.b16 %v121
    %v186 = vunpack.c.l.b16 %v122
    %v187 = vunpack.c.l.b16 %v123
    %v188 = vunpack.c.l.b16 %v124
    %v189 = vunpack.c.l.b16 %v125
    %v190 = vunpack.c.l.b16 %v126
    %v191 = vunpack.c.l.b16 %v127
    %v192 = vunpack.c.l.b16 %v128
    %v193 = vunpack.c.l.b16 %v129
    %v194 = vunpack.c.l.b16 %v130
    %v195 = vunpack.c.l.b16 %v131
    %v196 = vpack.c.b16 %v165, %v164
    %v197 = vpack.c.b16 %v167, %v166
    %v198 = vpack.c.b16 %v169, %v168
    %v199 = vpack.c.b16 %v171, %v170
    %v200 = vpack.c.b16 %v173, %v172
    %v201 = vpack.c.b16 %v175, %v174
    %v202 = vpack.c.b16 %v177, %v176
    %v203 = vpack.c.b16 %v179, %v178
    %v204 = vpack.c.b16 %v181, %v180
    %v205 = vpack.c.b16 %v183, %v182
    %v206 = vpack.c.b16 %v185, %v184
    %v207 = vpack.c.b16 %v187, %v186
    %v208 = vpack.c.b16 %v189, %v188
    %v209 = vpack.c.b16 %v191, %v190
    %v210 = vpack.c.b16 %v193, %v192
    %v211 = vpack.c.b16 %v195, %v194
    %228 = vmatprep.subr.bf16.mxu0 0
    %229 = vmatpush1.bf16.msra.mxu0 %v203
    %230 = vmatprep.subr.bf16.mxu0 0
    %231 = vmatpush1.bf16.msra.mxu0 %v202
    %232 = vmatprep.subr.bf16.mxu0 0
    %233 = vmatpush1.bf16.msra.mxu0 %v201
    %234 = vmatprep.subr.bf16.mxu0 0
    %235 = vmatpush1.bf16.msra.mxu0 %v200
    %236 = vmatprep.subr.bf16.mxu0 0
    %237 = vmatpush1.bf16.msra.mxu0 %v199
    %238 = vmatprep.subr.bf16.mxu0 0
    %239 = vmatpush1.bf16.msra.mxu0 %v198
    %240 = vmatprep.subr.bf16.mxu0 0
    %241 = vmatpush1.bf16.msra.mxu0 %v197
    %242 = vmatprep.subr.bf16.mxu0 0
    %243 = vmatpush1.bf16.msra.mxu0 %v196
    %244 = vmatprep.subr.bf16.mxu0 0
    %245 = vmatpush2.bf16.msra.mxu0 %v211
    %246 = vmatprep.subr.bf16.mxu0 0
    %247 = vmatpush2.bf16.msra.mxu0 %v210
    %248 = vmatprep.subr.bf16.mxu0 0
    %249 = vmatpush2.bf16.msra.mxu0 %v209
    %250 = vmatprep.subr.bf16.mxu0 0
    %251 = vmatpush2.bf16.msra.mxu0 %v208
    %252 = vmatprep.subr.bf16.mxu0 0
    %253 = vmatpush2.bf16.msra.mxu0 %v207
    %254 = vmatprep.subr.bf16.mxu0 0
    %255 = vmatpush2.bf16.msra.mxu0 %v206
    %256 = vmatprep.subr.bf16.mxu0 0
    %257 = vmatpush2.bf16.msra.mxu0 %v205
    %258 = vmatprep.subr.bf16.mxu0 0
    %259 = vmatpush2.bf16.msra.mxu0 %v204
    %260 = vmatprep.mubr.bf16.mxu0 %v99
    %261 = vmatmul.mubr.bf16.gmra.mxu0 %v98
    %v262 = vpop.f32.mrf.mxu0
    %v263 = vadd.f32 %v87, %v262
    %v264 = vpop.f32.mrf.mxu0
    %v265 = vpop.f32.mrf.mxu0
    %v266 = vadd.f32 %v87, %v265
    %v267 = vpop.f32.mrf.mxu0
    %268 = vdwg.mxu0
    %v269 = vmax.f32 %v263, 0.0
    %v270 = vmax.f32 %v266, 0.0
    %v271 = vpack.c.bf16 %v270, %v269
    %v272 = vld [vmem:[%s2] sm:$0xf]
    %v273 = vld [vmem:[%s2 + $0x4] sm:$0xf]
    %v274 = vld [vmem:[%s2 + $0x8] sm:$0xf]
    %v275 = vld [vmem:[%s2 + $0xc] sm:$0xf]
    %v276 = vld [vmem:[%s2 + $0x10] sm:$0xf]
    %v277 = vld [vmem:[%s2 + $0x14] sm:$0xf]
    %v278 = vld [vmem:[%s2 + $0x18] sm:$0xf]
    %v279 = vld [vmem:[%s2 + $0x1c] sm:$0xf]
    %v280 = vld [vmem:[%s2 + $0x20] sm:$0xf]
    %v281 = vld [vmem:[%s2 + $0x24] sm:$0xf]
    %v282 = vld [vmem:[%s2 + $0x28] sm:$0xf]
    %v283 = vld [vmem:[%s2 + $0x2c] sm:$0xf]
    %v284 = vld [vmem:[%s2 + $0x30] sm:$0xf]
    %v285 = vld [vmem:[%s2 + $0x34] sm:$0xf]
    %v286 = vld [vmem:[%s2 + $0x38] sm:$0xf]
    %v287 = vld [vmem:[%s2 + $0x3c] sm:$0xf]
    %v304 = vunpack.c.l.b16 %v272
    %v305 = vunpack.c.l.b16 %v273
    %v306 = vunpack.c.l.b16 %v274
    %v307 = vunpack.c.l.b16 %v275
    %v308 = vunpack.c.l.b16 %v276
    %v309 = vunpack.c.l.b16 %v277
    %v310 = vunpack.c.l.b16 %v278
    %v311 = vunpack.c.l.b16 %v279
    %v312 = vunpack.c.l.b16 %v280
    %v313 = vunpack.c.l.b16 %v281
    %v314 = vunpack.c.l.b16 %v282
    %v315 = vunpack.c.l.b16 %v283
    %v316 = vunpack.c.l.b16 %v284
    %v317 = vunpack.c.l.b16 %v285
    %v318 = vunpack.c.l.b16 %v286
    %v319 = vunpack.c.l.b16 %v287
    %v320 = vpack.c.b16 %v305, %v304
    %v321 = vpack.c.b16 %v307, %v306
    %v322 = vpack.c.b16 %v309, %v308
    %v323 = vpack.c.b16 %v311, %v310
    %v324 = vpack.c.b16 %v313, %v312
    %v325 = vpack.c.b16 %v315, %v314
    %v326 = vpack.c.b16 %v317, %v316
    %v327 = vpack.c.b16 %v319, %v318
    %336 = vmatprep.subr.bf16.mxu0 0
    %337 = vmatpush1.bf16.msra.mxu0 %v327
    %338 = vmatprep.subr.bf16.mxu0 0
    %339 = vmatpush1.bf16.msra.mxu0 %v326
    %340 = vmatprep.subr.bf16.mxu0 0
    %341 = vmatpush1.bf16.msra.mxu0 %v325
    %342 = vmatprep.subr.bf16.mxu0 0
    %343 = vmatpush1.bf16.msra.mxu0 %v324
    %344 = vmatprep.subr.bf16.mxu0 0
    %345 = vmatpush1.bf16.msra.mxu0 %v323
    %346 = vmatprep.subr.bf16.mxu0 0
    %347 = vmatpush1.bf16.msra.mxu0 %v322
    %348 = vmatprep.subr.bf16.mxu0 0
    %349 = vmatpush1.bf16.msra.mxu0 %v321
    %350 = vmatprep.subr.bf16.mxu0 0
    %351 = vmatpush1.bf16.msra.mxu0 %v320
    %352 = vmatprep.subr.bf16.mxu0 0
    %353 = vmatpush2.bf16.msra.mxu0 0
    %354 = vmatprep.subr.bf16.mxu0 0
    %355 = vmatpush2.bf16.msra.mxu0 0
    %356 = vmatprep.subr.bf16.mxu0 0
    %357 = vmatpush2.bf16.msra.mxu0 0
    %358 = vmatprep.subr.bf16.mxu0 0
    %359 = vmatpush2.bf16.msra.mxu0 0
    %360 = vmatprep.subr.bf16.mxu0 0
    %361 = vmatpush2.bf16.msra.mxu0 0
    %362 = vmatprep.subr.bf16.mxu0 0
    %363 = vmatpush2.bf16.msra.mxu0 0
    %364 = vmatprep.subr.bf16.mxu0 0
    %365 = vmatpush2.bf16.msra.mxu0 0
    %366 = vmatprep.subr.bf16.mxu0 0
    %367 = vmatpush2.bf16.msra.mxu0 0
    %368 = vmatprep.mubr.bf16.mxu0 0
    %369 = vmatmul.mubr.bf16.gmra.mxu0 %v271
    %v370 = vpop.f32.mrf.mxu0
    %v371 = vadd.f32 %v88, %v370
    %v372 = vpop.f32.mrf.mxu0
    %v373 = vpop.f32.mrf.mxu0
    %v374 = vadd.f32 %v88, %v373
    %v375 = vpop.f32.mrf.mxu0
    %376 = vdwg.mxu0
    %v377 = vmax.f32 %v371, 0.0
    %v378 = vmax.f32 %v374, 0.0
    %v379 = vpack.c.bf16 %v378, %v377
    %v380 = vld [vmem:[%s3] sm:$0xf]
    %v381 = vld [vmem:[%s3 + $0x4] sm:$0xf]
    %v382 = vld [vmem:[%s3 + $0x8] sm:$0xf]
    %v383 = vld [vmem:[%s3 + $0xc] sm:$0xf]
    %v384 = vld [vmem:[%s3 + $0x10] sm:$0xf]
    %v385 = vld [vmem:[%s3 + $0x14] sm:$0xf]
    %v386 = vld [vmem:[%s3 + $0x18] sm:$0xf]
    %v387 = vld [vmem:[%s3 + $0x1c] sm:$0xf]
    %v396 = vunpack.c.l.b16 %v380
    %v397 = vunpack.c.l.b16 %v381
    %v398 = vunpack.c.l.b16 %v382
    %v399 = vunpack.c.l.b16 %v383
    %v400 = vunpack.c.l.b16 %v384
    %v401 = vunpack.c.l.b16 %v385
    %v402 = vunpack.c.l.b16 %v386
    %v403 = vunpack.c.l.b16 %v387
    %v404 = vpack.c.b16 %v397, %v396
    %v405 = vpack.c.b16 %v399, %v398
    %v406 = vpack.c.b16 %v401, %v400
    %v407 = vpack.c.b16 %v403, %v402
    %vm412 = vcmask 523264
    %v414 = vsel %vm412, %v379, 0
    %416 = vmatprep.subr.bf16.mxu0 0
    %417 = vmatpush1.bf16.msra.mxu0 0
    %418 = vmatprep.subr.bf16.mxu0 0
    %419 = vmatpush1.bf16.msra.mxu0 0
    %420 = vmatprep.subr.bf16.mxu0 0
    %421 = vmatpush1.bf16.msra.mxu0 0
    %422 = vmatprep.subr.bf16.mxu0 0
    %423 = vmatpush1.bf16.msra.mxu0 0
    %424 = vmatprep.subr.bf16.mxu0 0
    %425 = vmatpush1.bf16.msra.mxu0 %v407
    %426 = vmatprep.subr.bf16.mxu0 0
    %427 = vmatpush1.bf16.msra.mxu0 %v406
    %428 = vmatprep.subr.bf16.mxu0 0
    %429 = vmatpush1.bf16.msra.mxu0 %v405
    %430 = vmatprep.subr.bf16.mxu0 0
    %431 = vmatpush1.bf16.msra.mxu0 %v404
    %432 = vmatprep.subr.bf16.mxu0 0
    %433 = vmatpush2.bf16.msra.mxu0 0
    %434 = vmatprep.subr.bf16.mxu0 0
    %435 = vmatpush2.bf16.msra.mxu0 0
    %436 = vmatprep.subr.bf16.mxu0 0
    %437 = vmatpush2.bf16.msra.mxu0 0
    %438 = vmatprep.subr.bf16.mxu0 0
    %439 = vmatpush2.bf16.msra.mxu0 0
    %440 = vmatprep.subr.bf16.mxu0 0
    %441 = vmatpush2.bf16.msra.mxu0 0
    %442 = vmatprep.subr.bf16.mxu0 0
    %443 = vmatpush2.bf16.msra.mxu0 0
    %444 = vmatprep.subr.bf16.mxu0 0
    %445 = vmatpush2.bf16.msra.mxu0 0
    %446 = vmatprep.subr.bf16.mxu0 0
    %447 = vmatpush2.bf16.msra.mxu0 0
    %448 = vmatprep.mubr.bf16.mxu0 0
    %449 = vmatmul.mubr.bf16.gmra.mxu0 %v414
    %v450 = vpop.f32.mrf.mxu0
    %v451 = vadd.f32 %v89, %v450
    %v452 = vpop.f32.mrf.mxu0
    %v453 = vpop.f32.mrf.mxu0
    %v454 = vadd.f32 %v89, %v453
    %v455 = vpop.f32.mrf.mxu0
    %456 = vdwg.mxu0
    %v457 = vpack.c.bf16 %v454, %v451
    %v458 = vld [vmem:[%s4] sm:$0xf]
    %v459 = vld [vmem:[%s4 + $0x4] sm:$0xf]
    %v460 = vld [vmem:[%s4 + $0x8] sm:$0xf]
    %v461 = vld [vmem:[%s4 + $0xc] sm:$0xf]
    %v466 = vunpack.c.l.b16 %v458
    %v467 = vunpack.c.l.b16 %v459
    %v468 = vunpack.c.l.b16 %v460
    %v469 = vunpack.c.l.b16 %v461
    %v470 = vpack.c.b16 %v467, %v466
    %v471 = vpack.c.b16 %v469, %v468
    %vm474 = vcmask 261120
    %v476 = vsel %vm474, %v457, 0
    %478 = vmatprep.subr.bf16.mxu0 0
    %479 = vmatpush1.bf16.msra.mxu0 0
    %480 = vmatprep.subr.bf16.mxu0 0
    %481 = vmatpush1.bf16.msra.mxu0 0
    %482 = vmatprep.subr.bf16.mxu0 0
    %483 = vmatpush1.bf16.msra.mxu0 0
    %484 = vmatprep.subr.bf16.mxu0 0
    %485 = vmatpush1.bf16.msra.mxu0 0
    %486 = vmatprep.subr.bf16.mxu0 0
    %487 = vmatpush1.bf16.msra.mxu0 0
    %488 = vmatprep.subr.bf16.mxu0 0
    %489 = vmatpush1.bf16.msra.mxu0 0
    %490 = vmatprep.subr.bf16.mxu0 0
    %491 = vmatpush1.bf16.msra.mxu0 %v471
    %492 = vmatprep.subr.bf16.mxu0 0
    %493 = vmatpush1.bf16.msra.mxu0 %v470
    %494 = vmatprep.subr.bf16.mxu0 0
    %495 = vmatpush2.bf16.msra.mxu0 0
    %496 = vmatprep.subr.bf16.mxu0 0
    %497 = vmatpush2.bf16.msra.mxu0 0
    %498 = vmatprep.subr.bf16.mxu0 0
    %499 = vmatpush2.bf16.msra.mxu0 0
    %500 = vmatprep.subr.bf16.mxu0 0
    %501 = vmatpush2.bf16.msra.mxu0 0
    %502 = vmatprep.subr.bf16.mxu0 0
    %503 = vmatpush2.bf16.msra.mxu0 0
    %504 = vmatprep.subr.bf16.mxu0 0
    %505 = vmatpush2.bf16.msra.mxu0 0
    %506 = vmatprep.subr.bf16.mxu0 0
    %507 = vmatpush2.bf16.msra.mxu0 0
    %508 = vmatprep.subr.bf16.mxu0 0
    %509 = vmatpush2.bf16.msra.mxu0 0
    %510 = vmatprep.mubr.bf16.mxu0 0
    %511 = vmatmul.mubr.bf16.gmra.mxu0 %v476
    %v512 = vpop.f32.mrf.mxu0
    %v513 = vadd.f32 %v90, %v512
    %v514 = vpop.f32.mrf.mxu0
    %v515 = vpop.f32.mrf.mxu0
    %v516 = vadd.f32 %v90, %v515
    %v517 = vpop.f32.mrf.mxu0
    %518 = vdwg.mxu0
    %v519 = vmax.f32 %v513, 0.0
    %v520 = vmax.f32 %v516, 0.0
    %v521 = vpack.c.bf16 %v520, %v519
    %v522 = vld [vmem:[#allocation5] sm:$0xf]
    %v523 = vld [vmem:[#allocation5 + $0x4] sm:$0xf]
    %v524 = vld [vmem:[#allocation5 + $0x8] sm:$0xf]
    %v525 = vld [vmem:[#allocation5 + $0xc] sm:$0xf]
    %v526 = vld [vmem:[#allocation5 + $0x10] sm:$0xf]
    %v527 = vld [vmem:[#allocation5 + $0x14] sm:$0xf]
    %v528 = vld [vmem:[#allocation5 + $0x18] sm:$0xf]
    %v529 = vld [vmem:[#allocation5 + $0x1c] sm:$0xf]
    %v538 = vunpack.c.l.b16 %v522
    %v539 = vunpack.c.l.b16 %v523
    %v540 = vunpack.c.l.b16 %v524
    %v541 = vunpack.c.l.b16 %v525
    %v542 = vunpack.c.l.b16 %v526
    %v543 = vunpack.c.l.b16 %v527
    %v544 = vunpack.c.l.b16 %v528
    %v545 = vunpack.c.l.b16 %v529
    %v546 = vpack.c.b16 %v539, %v538
    %v547 = vpack.c.b16 %v541, %v540
    %v548 = vpack.c.b16 %v543, %v542
    %v549 = vpack.c.b16 %v545, %v544
    %v555 = vsel %vm412, %v521, 0
    %557 = vmatprep.subr.bf16.mxu0 0
    %558 = vmatpush1.bf16.msra.mxu0 0
    %559 = vmatprep.subr.bf16.mxu0 0
    %560 = vmatpush1.bf16.msra.mxu0 0
    %561 = vmatprep.subr.bf16.mxu0 0
    %562 = vmatpush1.bf16.msra.mxu0 0
    %563 = vmatprep.subr.bf16.mxu0 0
    %564 = vmatpush1.bf16.msra.mxu0 0
    %565 = vmatprep.subr.bf16.mxu0 0
    %566 = vmatpush1.bf16.msra.mxu0 %v549
    %567 = vmatprep.subr.bf16.mxu0 0
    %568 = vmatpush1.bf16.msra.mxu0 %v548
    %569 = vmatprep.subr.bf16.mxu0 0
    %570 = vmatpush1.bf16.msra.mxu0 %v547
    %571 = vmatprep.subr.bf16.mxu0 0
    %572 = vmatpush1.bf16.msra.mxu0 %v546
    %573 = vmatprep.subr.bf16.mxu0 0
    %574 = vmatpush2.bf16.msra.mxu0 0
    %575 = vmatprep.subr.bf16.mxu0 0
    %576 = vmatpush2.bf16.msra.mxu0 0
    %577 = vmatprep.subr.bf16.mxu0 0
    %578 = vmatpush2.bf16.msra.mxu0 0
    %579 = vmatprep.subr.bf16.mxu0 0
    %580 = vmatpush2.bf16.msra.mxu0 0
    %581 = vmatprep.subr.bf16.mxu0 0
    %582 = vmatpush2.bf16.msra.mxu0 0
    %583 = vmatprep.subr.bf16.mxu0 0
    %584 = vmatpush2.bf16.msra.mxu0 0
    %585 = vmatprep.subr.bf16.mxu0 0
    %586 = vmatpush2.bf16.msra.mxu0 0
    %587 = vmatprep.subr.bf16.mxu0 0
    %588 = vmatpush2.bf16.msra.mxu0 0
    %589 = vmatprep.mubr.bf16.mxu0 0
    %590 = vmatmul.mubr.bf16.gmra.mxu0 %v555
    %v591 = vpop.f32.mrf.mxu0
    %v592 = vadd.f32 %v91, %v591
    %v593 = vpop.f32.mrf.mxu0
    %v594 = vpop.f32.mrf.mxu0
    %v595 = vadd.f32 %v91, %v594
    %v596 = vpop.f32.mrf.mxu0
    %597 = vdwg.mxu0
    %v598 = vmax.f32 %v592, 0.0
    %v599 = vmax.f32 %v595, 0.0
    %v600 = vpack.c.bf16 %v599, %v598
    %v601 = vld [vmem:[#allocation7] sm:$0xff]
    %v602 = vld [vmem:[#allocation7 + $0x8] sm:$0xff]
    %v603 = vld [vmem:[#allocation7 + $0x10] sm:$0xff]
    %v604 = vld [vmem:[#allocation7 + $0x18] sm:$0xff]
    %v605 = vld [vmem:[#allocation7 + $0x20] sm:$0xff]
    %v606 = vld [vmem:[#allocation7 + $0x28] sm:$0xff]
    %v607 = vld [vmem:[#allocation7 + $0x30] sm:$0xff]
    %v608 = vld [vmem:[#allocation7 + $0x38] sm:$0xff]
    %v609 = vld [vmem:[#allocation7 + $0x40] sm:$0xff]
    %v610 = vld [vmem:[#allocation7 + $0x48] sm:$0xff]
    %v611 = vld [vmem:[#allocation7 + $0x50] sm:$0xff]
    %v612 = vld [vmem:[#allocation7 + $0x58] sm:$0xff]
    %v613 = vld [vmem:[#allocation7 + $0x60] sm:$0xff]
    %v614 = vld [vmem:[#allocation7 + $0x68] sm:$0xff]
    %v615 = vld [vmem:[#allocation7 + $0x70] sm:$0xff]
    %v616 = vld [vmem:[#allocation7 + $0x78] sm:$0xff]
    %v618 = vlaneseq
    %v619 = vshrl.u32 %v618, 7
    %v620 = vsub.s32 0, %v619
    %v621 = vrot.slane %v93, %v620
    %v622 = vlaneseq
    %v623 = vshrl.u32 %v622, 7
    %v624 = vsub.s32 1, %v623
    %v625 = vrot.slane %v93, %v624
    %v644 = vunpack.c.l.b16 %v601
    %v645 = vunpack.c.h.b16 %v601
    %v646 = vunpack.c.l.b16 %v602
    %v647 = vunpack.c.h.b16 %v602
    %v648 = vunpack.c.l.b16 %v603
    %v649 = vunpack.c.h.b16 %v603
    %v650 = vunpack.c.l.b16 %v604
    %v651 = vunpack.c.h.b16 %v604
    %v652 = vunpack.c.l.b16 %v605
    %v653 = vunpack.c.h.b16 %v605
    %v654 = vunpack.c.l.b16 %v606
    %v655 = vunpack.c.h.b16 %v606
    %v656 = vunpack.c.l.b16 %v607
    %v657 = vunpack.c.h.b16 %v607
    %v658 = vunpack.c.l.b16 %v608
    %v659 = vunpack.c.h.b16 %v608
    %v660 = vunpack.c.l.b16 %v609
    %v661 = vunpack.c.h.b16 %v609
    %v662 = vunpack.c.l.b16 %v610
    %v663 = vunpack.c.h.b16 %v610
    %v664 = vunpack.c.l.b16 %v611
    %v665 = vunpack.c.h.b16 %v611
    %v666 = vunpack.c.l.b16 %v612
    %v667 = vunpack.c.h.b16 %v612
    %v668 = vunpack.c.l.b16 %v613
    %v669 = vunpack.c.h.b16 %v613
    %v670 = vunpack.c.l.b16 %v614
    %v671 = vunpack.c.h.b16 %v614
    %v672 = vunpack.c.l.b16 %v615
    %v673 = vunpack.c.h.b16 %v615
    %v674 = vunpack.c.l.b16 %v616
    %v675 = vunpack.c.h.b16 %v616
    %v676 = vpack.c.b16 %v646, %v644
    %v677 = vpack.c.b16 %v647, %v645
    %v678 = vpack.c.b16 %v650, %v648
    %v679 = vpack.c.b16 %v651, %v649
    %v680 = vpack.c.b16 %v654, %v652
    %v681 = vpack.c.b16 %v655, %v653
    %v682 = vpack.c.b16 %v658, %v656
    %v683 = vpack.c.b16 %v659, %v657
    %v684 = vpack.c.b16 %v662, %v660
    %v685 = vpack.c.b16 %v663, %v661
    %v686 = vpack.c.b16 %v666, %v664
    %v687 = vpack.c.b16 %v667, %v665
    %v688 = vpack.c.b16 %v670, %v668
    %v689 = vpack.c.b16 %v671, %v669
    %v690 = vpack.c.b16 %v674, %v672
    %v691 = vpack.c.b16 %v675, %v673
    %708 = vmatprep.subr.bf16.mxu0 %v691
    %709 = vmatpush1.bf16.msra.mxu0 %v690
    %710 = vmatprep.subr.bf16.mxu0 %v689
    %711 = vmatpush1.bf16.msra.mxu0 %v688
    %712 = vmatprep.subr.bf16.mxu0 %v687
    %713 = vmatpush1.bf16.msra.mxu0 %v686
    %714 = vmatprep.subr.bf16.mxu0 %v685
    %715 = vmatpush1.bf16.msra.mxu0 %v684
    %716 = vmatprep.subr.bf16.mxu0 %v683
    %717 = vmatpush1.bf16.msra.mxu0 %v682
    %718 = vmatprep.subr.bf16.mxu0 %v681
    %719 = vmatpush1.bf16.msra.mxu0 %v680
    %720 = vmatprep.subr.bf16.mxu0 %v679
    %721 = vmatpush1.bf16.msra.mxu0 %v678
    %722 = vmatprep.subr.bf16.mxu0 %v677
    %723 = vmatpush1.bf16.msra.mxu0 %v676
    %724 = vmatprep.subr.bf16.mxu0 0
    %725 = vmatpush2.bf16.msra.mxu0 0
    %726 = vmatprep.subr.bf16.mxu0 0
    %727 = vmatpush2.bf16.msra.mxu0 0
    %728 = vmatprep.subr.bf16.mxu0 0
    %729 = vmatpush2.bf16.msra.mxu0 0
    %730 = vmatprep.subr.bf16.mxu0 0
    %731 = vmatpush2.bf16.msra.mxu0 0
    %732 = vmatprep.subr.bf16.mxu0 0
    %733 = vmatpush2.bf16.msra.mxu0 0
    %734 = vmatprep.subr.bf16.mxu0 0
    %735 = vmatpush2.bf16.msra.mxu0 0
    %736 = vmatprep.subr.bf16.mxu0 0
    %737 = vmatpush2.bf16.msra.mxu0 0
    %738 = vmatprep.subr.bf16.mxu0 0
    %739 = vmatpush2.bf16.msra.mxu0 0
    %740 = vmatprep.mubr.bf16.mxu0 0
    %741 = vmatmul.mubr.bf16.gmra.mxu0 %v600
    %v742 = vpop.f32.mrf.mxu0
    %v743 = vadd.f32 %v621, %v742
    %v744 = vpop.f32.mrf.mxu0
    %v745 = vadd.f32 %v625, %v744
    %v746 = vpop.f32.mrf.mxu0
    %v747 = vadd.f32 %v621, %v746
    %v748 = vpop.f32.mrf.mxu0
    %v749 = vadd.f32 %v625, %v748
    %750 = vdwg.mxu0
    %v751 = vxor.u32 %v743, 2147483648
    %v752 = vxor.u32 %v745, 2147483648
    %v753 = vxor.u32 %v747, 2147483648
    %v754 = vxor.u32 %v749, 2147483648
    %v755 = vmul.f32 %v751, 1.442695
    %v756 = vpow.pop %v755
    %v757 = vmul.f32 %v752, 1.442695
    %v758 = vpow.pop %v757
    %v759 = vmul.f32 %v753, 1.442695
    %v760 = vpow.pop %v759
    %v761 = vmul.f32 %v754, 1.442695
    %v762 = vpow.pop %v761
    %v763 = vadd.f32 %v756, 1.0
    %v764 = vadd.f32 %v758, 1.0
    %v765 = vadd.f32 %v760, 1.0
    %v766 = vadd.f32 %v762, 1.0
    %v767 = vrcp.pop %v763
    %v768 = vmul.f32 1.0, %v767
    %v769 = vrcp.pop %v764
    %v770 = vmul.f32 1.0, %v769
    %v771 = vrcp.pop %v765
    %v772 = vmul.f32 1.0, %v771
    %v773 = vrcp.pop %v766
    %v774 = vmul.f32 1.0, %v773
    %775 = vst [vmem:[#allocation10] sm:$0xff] %v768
    %776 = vst [vmem:[#allocation10 + $0x8] sm:$0xff] %v770
    %777 = vst [vmem:[#allocation10 + $0x10] sm:$0xff] %v772
    %778 = vst [vmem:[#allocation10 + $0x18] sm:$0xff] %v774
    %779 = vst.msk [vmem:[#allocation11] sm:$0xff] %vm474, %v451
    %780 = vst.msk [vmem:[#allocation11 + $0x8] sm:$0xff] %vm474, %v454
    // Predicated region
    $region50: #{autoencoder_forward.1} parent=1 // pred_check
      _
    $region51: #{autoencoder_forward.1} parent=1 // pred_check_branch
      %782 = sbr.rel (0) target = $region53
    $region52: #{autoencoder_forward.1} parent=1 // pred_region
      %s784 = ssub.s32 512, 512
      %785 = vsyncadd [#allocation4], %s784
      %s786 = sshll.u32 [#allocation10], 4
      %s787 = int_to_ptr.vmem [resolvable:$true] %s786
      %792 = dma.vmem_to_hbm [thread:$0]  %s787, 512, %s8, [#allocation4], 256, 256, 16
    $region53: #{autoencoder_forward.1} parent=1 // pred_fallthru
      _
    // Predicated region
    $region54: #{autoencoder_forward.1} parent=1 // pred_check
      _
    $region55: #{autoencoder_forward.1} parent=1 // pred_check_branch
      %794 = sbr.rel (0) target = $region57
    $region56: #{autoencoder_forward.1} parent=1 // pred_region
      %s796 = ssub.s32 256, 256
      %797 = vsyncadd [#allocation12], %s796
      %s798 = sshll.u32 [#allocation11], 4
      %s799 = int_to_ptr.vmem [resolvable:$true] %s798
      %804 = dma.vmem_to_hbm [thread:$0]  %s799, 256, %s9, [#allocation12], 128, 128, 8
    $region57: #{autoencoder_forward.1} parent=1 // pred_fallthru
      _
    // Predicated region
    $region58: #{autoencoder_forward.1} parent=1 // pred_check
      _
    $region59: #{autoencoder_forward.1} parent=1 // pred_check_branch
      %806 = sbr.rel (0) target = $region61
    $region60: #{autoencoder_forward.1} parent=1 // pred_region
      %807 = dma.done [#allocation4], 512
    $region61: #{autoencoder_forward.1} parent=1 // pred_fallthru
      _
    // Predicated region
    $region62: #{autoencoder_forward.1} parent=1 // pred_check
      _
    $region63: #{autoencoder_forward.1} parent=1 // pred_check_branch
      %809 = sbr.rel (0) target = $region65
    $region64: #{autoencoder_forward.1} parent=1 // pred_region
      %810 = dma.done [#allocation12], 256
    $region65: #{autoencoder_forward.1} parent=1 // pred_fallthru
      _
    %811 = vsyncpa [#allocation3], 1
    %812 = vsyncpa [#allocation6], 1
    %813 = vsyncpa [#allocation9], 1
    %814 = vsyncpa [#allocation4], 1
    %815 = vsyncpa [#allocation12], 1

</llo_original>
